<compile_context>
chip_gen: v5e
topology: v5e:2x2
jax: 0.10.0
libtpu: 0.0.40
codegen_flags: <defaults>
</compile_context>

<pallas_src>
import functools

import jax
import jax.numpy as jnp
from jax import lax
from jax.experimental import pallas as pl
from jax.experimental.pallas import tpu as pltpu

BN_EPS = 1e-5


def _round_up(x, m):
    return (x + m - 1) // m * m


# --------------------------------------------------------------------------- #
# Pass 1: tiled matmul + bias, accumulating per-channel sum / sum-of-squares.  #
# --------------------------------------------------------------------------- #
def _conv_bias_stats_kernel(p_ref, w_ref, b_ref, y_ref, sum_ref, sq_ref, *,
                            tile_m, m_valid, need_mask):
    k = pl.program_id(1)
    nk = pl.num_programs(1)

    @pl.when(k == 0)
    def _init():
        y_ref[...] = jnp.zeros_like(y_ref)

    # MXU: bf16 x bf16 -> f32 accumulation into the resident output block.
    y_ref[...] += jnp.dot(p_ref[...], w_ref[...],
                          preferred_element_type=jnp.float32)

    @pl.when(k == nk - 1)
    def _finalize():
        y = y_ref[...] + b_ref[...]          # conv bias (broadcast over rows)
        y_ref[...] = y
        if need_mask:
            rows = (pl.program_id(0) * tile_m
                    + lax.broadcasted_iota(jnp.int32, (tile_m, 1), 0))
            y = jnp.where(rows < m_valid, y, 0.0)
        s = jnp.sum(y, axis=0, keepdims=True)          # (1, C_PAD)
        ss = jnp.sum(y * y, axis=0, keepdims=True)     # (1, C_PAD)
        cpad = s.shape[-1]
        sum_ref[...] = jnp.broadcast_to(s, (8, cpad))[None]
        sq_ref[...] = jnp.broadcast_to(ss, (8, cpad))[None]


# --------------------------------------------------------------------------- #
# Pass 2: per-element fused BatchNorm (scale/shift precomputed) + activation.  #
# --------------------------------------------------------------------------- #
def _bn_act_kernel(y_ref, scale_ref, shift_ref, o_ref, *, act):
    v = y_ref[...] * scale_ref[...] + shift_ref[...]
    if act == "elu":
        v = jnp.where(v > 0, v, jnp.expm1(v))
    o_ref[...] = v.astype(o_ref.dtype)


def conv_block_forward(x_nchw, w_oihw, bias, gamma, beta,
                       *, stride=2, padding=1, activation="lrelu"):
    N, C_in, H, W = x_nchw.shape
    C_out, _, KH, KW = w_oihw.shape
    H_out = (H + 2 * padding - KH) // stride + 1
    W_out = (W + 2 * padding - KW) // stride + 1

    M = N * H_out * W_out
    K = KH * KW * C_in

    # Padded / tiled sizes (lane-dense C, 128-aligned K, tiled M).
    C_PAD = _round_up(C_out, 128)
    K_PAD = _round_up(K, 128)
    TILE_M = 1024 if M >= 1024 else _round_up(M, 16)
    M_PAD = _round_up(M, TILE_M)
    TILE_K = next(t for t in (512, 256, 128) if K_PAD % t == 0)
    num_m = M_PAD // TILE_M
    num_k = K_PAD // TILE_K

    # ---- glue: NCHW -> NHWC (bf16), pad, im2col ----------------------------
    x = jnp.transpose(x_nchw, (0, 2, 3, 1)).astype(jnp.bfloat16)
    x = jnp.pad(x, ((0, 0), (padding, padding), (padding, padding), (0, 0)))
    cols = []
    for kh in range(KH):
        for kw in range(KW):
            cols.append(x[:, kh:kh + stride * H_out:stride,
                          kw:kw + stride * W_out:stride, :])
    patches = jnp.stack(cols, axis=3).reshape(M, K)            # (M, K) bf16
    patches = jnp.pad(patches, ((0, M_PAD - M), (0, K_PAD - K)))

    # weight (C_out, C_in, KH, KW) -> (KH, KW, C_in, C_out) -> (K, C_out), bf16
    w_mat = jnp.transpose(w_oihw, (2, 3, 1, 0)).reshape(K, C_out)
    w_mat = jnp.pad(w_mat.astype(jnp.bfloat16),
                    ((0, K_PAD - K), (0, C_PAD - C_out)))
    b_p = jnp.pad(bias.astype(jnp.float32), (0, C_PAD - C_out)).reshape(1, C_PAD)
    g_p = jnp.pad(gamma.astype(jnp.float32), (0, C_PAD - C_out))
    be_p = jnp.pad(beta.astype(jnp.float32), (0, C_PAD - C_out))

    # ---- pass 1: conv (matmul) + bias + BN statistics ----------------------
    kernel1 = functools.partial(_conv_bias_stats_kernel,
                                tile_m=TILE_M, m_valid=M,
                                need_mask=(M_PAD != M))
    y, s_out, ss_out = pl.pallas_call(
        kernel1,
        out_shape=(jax.ShapeDtypeStruct((M_PAD, C_PAD), jnp.float32),
                   jax.ShapeDtypeStruct((num_m, 8, C_PAD), jnp.float32),
                   jax.ShapeDtypeStruct((num_m, 8, C_PAD), jnp.float32)),
        grid=(num_m, num_k),
        in_specs=[
            pl.BlockSpec((TILE_M, TILE_K), lambda m, k: (m, k)),
            pl.BlockSpec((TILE_K, C_PAD), lambda m, k: (k, 0)),
            pl.BlockSpec((1, C_PAD), lambda m, k: (0, 0)),
        ],
        out_specs=(
            pl.BlockSpec((TILE_M, C_PAD), lambda m, k: (m, 0)),
            pl.BlockSpec((1, 8, C_PAD), lambda m, k: (m, 0, 0)),
            pl.BlockSpec((1, 8, C_PAD), lambda m, k: (m, 0, 0)),
        ),
        compiler_params=pltpu.CompilerParams(
            dimension_semantics=("parallel", "arbitrary"),
            vmem_limit_bytes=32 * 1024 * 1024),
    )(patches, w_mat, b_p)

    # ---- tiny per-channel fold: mean/var -> scale/shift --------------------
    s_tot = jnp.sum(s_out[:, 0, :], axis=0)
    ss_tot = jnp.sum(ss_out[:, 0, :], axis=0)
    mean = s_tot / M
    var = jnp.maximum(ss_tot / M - mean * mean, 0.0)
    scale = g_p * lax.rsqrt(var + BN_EPS)
    shift = be_p - mean * scale
    scale2 = scale.reshape(1, C_PAD)
    shift2 = shift.reshape(1, C_PAD)

    # Effective activation: only 'elu' survives the module's trailing `else`.
    eff_act = "elu" if activation == "elu" else "identity"

    # ---- pass 2: normalize + activation, in place over the conv output -----
    kernel2 = functools.partial(_bn_act_kernel, act=eff_act)
    out = pl.pallas_call(
        kernel2,
        out_shape=jax.ShapeDtypeStruct((M_PAD, C_PAD), jnp.float32),
        grid=(num_m,),
        in_specs=[
            pl.BlockSpec((TILE_M, C_PAD), lambda m: (m, 0)),
            pl.BlockSpec((1, C_PAD), lambda m: (0, 0)),
            pl.BlockSpec((1, C_PAD), lambda m: (0, 0)),
        ],
        out_specs=pl.BlockSpec((TILE_M, C_PAD), lambda m: (m, 0)),
        input_output_aliases={0: 0},
        compiler_params=pltpu.CompilerParams(
            dimension_semantics=("parallel",)),
    )(y, scale2, shift2)

    out = out[:M, :C_out].reshape(N, H_out, W_out, C_out)
    return jnp.transpose(out, (0, 3, 1, 2))                   # back to NCHW


def _reference(x_nchw, w_oihw, bias, gamma, beta):
    """Plain-JAX reference (same bf16 input precision, f32 accumulation)."""
    xb = x_nchw.astype(jnp.bfloat16).astype(jnp.float32)
    wb = w_oihw.astype(jnp.bfloat16).astype(jnp.float32)
    y = lax.conv_general_dilated(
        xb, wb, window_strides=(2, 2), padding=((1, 1), (1, 1)),
        dimension_numbers=("NCHW", "OIHW", "NCHW"))
    y = y + bias[None, :, None, None]
    mean = jnp.mean(y, axis=(0, 2, 3), keepdims=True)
    var = jnp.mean((y - mean) ** 2, axis=(0, 2, 3), keepdims=True)
    y = (y - mean) / jnp.sqrt(var + BN_EPS)
    y = y * gamma[None, :, None, None] + beta[None, :, None, None]
    return y  # activation is identity for the default 'lrelu' path


if __name__ == "__main__":
    key = jax.random.PRNGKey(0)
    k_x, k_w, k_b = jax.random.split(key, 3)

    N, C_in, H, W = 2, 4, 16, 16
    C_out, KH, KW = 8, 4, 4

    x = jax.random.normal(k_x, (N, C_in, H, W), dtype=jnp.float32)
    w = jax.random.normal(k_w, (C_out, C_in, KH, KW), dtype=jnp.float32) * 0.1
    b = jax.random.normal(k_b, (C_out,), dtype=jnp.float32) * 0.1
    gamma = jnp.ones((C_out,), dtype=jnp.float32)   # BatchNorm2d default init
    beta = jnp.zeros((C_out,), dtype=jnp.float32)

    fwd = jax.jit(functools.partial(conv_block_forward, activation="lrelu"))
    out = jax.block_until_ready(fwd(x, w, b, gamma, beta))

    ref = jax.block_until_ready(_reference(x, w, b, gamma, beta))
    assert out.shape == (N, C_out, H // 2, W // 2), out.shape
    err = float(jnp.max(jnp.abs(out - ref)))
    assert jnp.allclose(out, ref, atol=5e-3, rtol=5e-3), err

    print("KERNEL_OK")
</pallas_src>

<mosaic_0001>
module attributes {stable_mosaic.version = 11 : i64} {
  func.func @_bn_act_kernel(%arg0: i32, %arg1: memref<128x128xf32, #tpu.memory_space<vmem>>, %arg2: memref<1x128xf32, #tpu.memory_space<vmem>>, %arg3: memref<1x128xf32, #tpu.memory_space<vmem>>, %arg4: memref<128x128xf32, #tpu.memory_space<vmem>>) attributes {dimension_semantics = [#tpu.dimension_semantics<parallel>], iteration_bounds = array<i64: 1>, scalar_prefetch = 0 : i64, scratch_operands = 0 : i64, tpu.core_type = #tpu.core_type<tc>, window_params = [{transform_indices = @transform_0, window_bounds = array<i64: 128, 128>}, {pipeline_mode = #tpu.pipeline_mode<synchronous>, transform_indices = @transform_1, window_bounds = array<i64: 1, 128>}, {pipeline_mode = #tpu.pipeline_mode<synchronous>, transform_indices = @transform_2, window_bounds = array<i64: 1, 128>}, {transform_indices = @transform_3, window_bounds = array<i64: 128, 128>}]} {
    %c0 = arith.constant 0 : index
    %c0_0 = arith.constant 0 : index
    %0 = vector.load %arg1[%c0, %c0_0] : memref<128x128xf32, #tpu.memory_space<vmem>>, vector<128x128xf32>
    %c0_1 = arith.constant 0 : index
    %c0_2 = arith.constant 0 : index
    %1 = vector.load %arg2[%c0_1, %c0_2] : memref<1x128xf32, #tpu.memory_space<vmem>>, vector<1x128xf32>
    %2 = vector.broadcast %1 : vector<1x128xf32> to vector<128x128xf32>
    %3 = arith.mulf %0, %2 : vector<128x128xf32>
    %c0_3 = arith.constant 0 : index
    %c0_4 = arith.constant 0 : index
    %4 = vector.load %arg3[%c0_3, %c0_4] : memref<1x128xf32, #tpu.memory_space<vmem>>, vector<1x128xf32>
    %5 = vector.broadcast %4 : vector<1x128xf32> to vector<128x128xf32>
    %6 = arith.addf %3, %5 : vector<128x128xf32>
    %c0_5 = arith.constant 0 : index
    %c0_6 = arith.constant 0 : index
    %7 = vector.load %arg4[%c0_5, %c0_6] : memref<128x128xf32, #tpu.memory_space<vmem>>, vector<128x128xf32>
    tpu.vector_store %arg4[%c0_5, %c0_6], %6 {strides = array<i32>} : memref<128x128xf32, #tpu.memory_space<vmem>>, vector<128x128xf32>,
    return
  }
  func.func @transform_0(%arg0: i32) -> (i32, i32) {
    %c0_i32 = arith.constant 0 : i32
    %c0_i32_0 = arith.constant 0 : i32
    return %arg0, %c0_i32 : i32, i32
  }
  func.func @transform_1(%arg0: i32) -> (i32, i32) {
    %c0_i32 = arith.constant 0 : i32
    %c0_i32_0 = arith.constant 0 : i32
    %c0_i32_1 = arith.constant 0 : i32
    return %c0_i32, %c0_i32_0 : i32, i32
  }
  func.func @transform_2(%arg0: i32) -> (i32, i32) {
    %c0_i32 = arith.constant 0 : i32
    %c0_i32_0 = arith.constant 0 : i32
    %c0_i32_1 = arith.constant 0 : i32
    return %c0_i32, %c0_i32_0 : i32, i32
  }
  func.func @transform_3(%arg0: i32) -> (i32, i32) {
    %c0_i32 = arith.constant 0 : i32
    %c0_i32_0 = arith.constant 0 : i32
    return %arg0, %c0_i32 : i32, i32
  }
}

module attributes {stable_mosaic.version = 11 : i64} {
  func.func @_conv_bias_stats_kernel(%arg0: i32, %arg1: i32, %arg2: memref<128x128xbf16, #tpu.memory_space<vmem>>, %arg3: memref<128x128xbf16, #tpu.memory_space<vmem>>, %arg4: memref<1x128xf32, #tpu.memory_space<vmem>>, %arg5: memref<128x128xf32, #tpu.memory_space<vmem>>, %arg6: memref<1x8x128xf32, #tpu.memory_space<vmem>>, %arg7: memref<1x8x128xf32, #tpu.memory_space<vmem>>) attributes {dimension_semantics = [#tpu.dimension_semantics<parallel>, #tpu.dimension_semantics<arbitrary>], iteration_bounds = array<i64: 1, 1>, scalar_prefetch = 0 : i64, scratch_operands = 0 : i64, tpu.core_type = #tpu.core_type<tc>, window_params = [{transform_indices = @transform_0, window_bounds = array<i64: 128, 128>}, {transform_indices = @transform_1, window_bounds = array<i64: 128, 128>}, {pipeline_mode = #tpu.pipeline_mode<synchronous>, transform_indices = @transform_2, window_bounds = array<i64: 1, 128>}, {transform_indices = @transform_3, window_bounds = array<i64: 128, 128>}, {transform_indices = @transform_4, window_bounds = array<i64: 1, 8, 128>}, {transform_indices = @transform_5, window_bounds = array<i64: 1, 8, 128>}]} {
    %c0_i32 = arith.constant 0 : i32
    %0 = arith.cmpi eq, %arg1, %c0_i32 : i32
    %1 = arith.extui %0 : i1 to i32
    %c0_i32_0 = arith.constant 0 : i32
    %2 = arith.cmpi ne, %1, %c0_i32_0 : i32
    scf.if %2 {
      %cst_10 = arith.constant 0.000000e+00 : f32
      %12 = vector.broadcast %cst_10 : f32 to vector<128x128xf32>
      %c0_11 = arith.constant 0 : index
      %c0_12 = arith.constant 0 : index
      %13 = vector.load %arg5[%c0_11, %c0_12] : memref<128x128xf32, #tpu.memory_space<vmem>>, vector<128x128xf32>
      tpu.vector_store %arg5[%c0_11, %c0_12], %12 {strides = array<i32>} : memref<128x128xf32, #tpu.memory_space<vmem>>, vector<128x128xf32>,
    } else {
    }
    %c0 = arith.constant 0 : index
    %c0_1 = arith.constant 0 : index
    %3 = vector.load %arg5[%c0, %c0_1] : memref<128x128xf32, #tpu.memory_space<vmem>>, vector<128x128xf32>
    %c0_2 = arith.constant 0 : index
    %c0_3 = arith.constant 0 : index
    %4 = vector.load %arg2[%c0_2, %c0_3] : memref<128x128xbf16, #tpu.memory_space<vmem>>, vector<128x128xbf16>
    %c0_4 = arith.constant 0 : index
    %c0_5 = arith.constant 0 : index
    %5 = vector.load %arg3[%c0_4, %c0_5] : memref<128x128xbf16, #tpu.memory_space<vmem>>, vector<128x128xbf16>
    %cst = arith.constant dense<0.000000e+00> : vector<128x128xf32>
    %6 = tpu.matmul %4, %5, %cst {dimension_numbers = #tpu.dot_dimension_numbers<[1], [0], [0], [1], [0, 0, 1, 1], [], []>} : vector<128x128xbf16>, vector<128x128xbf16>, vector<128x128xf32> -> vector<128x128xf32>
    %7 = arith.addf %3, %6 : vector<128x128xf32>
    %c0_6 = arith.constant 0 : index
    %c0_7 = arith.constant 0 : index
    %8 = vector.load %arg5[%c0_6, %c0_7] : memref<128x128xf32, #tpu.memory_space<vmem>>, vector<128x128xf32>
    tpu.vector_store %arg5[%c0_6, %c0_7], %7 {strides = array<i32>} : memref<128x128xf32, #tpu.memory_space<vmem>>, vector<128x128xf32>,
    %c0_i32_8 = arith.constant 0 : i32
    %9 = arith.cmpi eq, %arg1, %c0_i32_8 : i32
    %10 = arith.extui %9 : i1 to i32
    %c0_i32_9 = arith.constant 0 : i32
    %11 = arith.cmpi ne, %10, %c0_i32_9 : i32
    scf.if %11 {
      %c0_10 = arith.constant 0 : index
      %c0_11 = arith.constant 0 : index
      %12 = vector.load %arg5[%c0_10, %c0_11] : memref<128x128xf32, #tpu.memory_space<vmem>>, vector<128x128xf32>
      %c0_12 = arith.constant 0 : index
      %c0_13 = arith.constant 0 : index
      %13 = vector.load %arg4[%c0_12, %c0_13] : memref<1x128xf32, #tpu.memory_space<vmem>>, vector<1x128xf32>
      %14 = vector.broadcast %13 : vector<1x128xf32> to vector<128x128xf32>
      %15 = arith.addf %12, %14 : vector<128x128xf32>
      %c0_14 = arith.constant 0 : index
      %c0_15 = arith.constant 0 : index
      %16 = vector.load %arg5[%c0_14, %c0_15] : memref<128x128xf32, #tpu.memory_space<vmem>>, vector<128x128xf32>
      tpu.vector_store %arg5[%c0_14, %c0_15], %15 {strides = array<i32>} : memref<128x128xf32, #tpu.memory_space<vmem>>, vector<128x128xf32>,
      %cst_16 = arith.constant dense<0.000000e+00> : vector<128xf32>
      %17 = vector.multi_reduction <add>, %15, %cst_16 [0] : vector<128x128xf32> to vector<128xf32>
      %18 = vector.shape_cast %17 : vector<128xf32> to vector<1x128xf32>
      %19 = arith.mulf %15, %15 : vector<128x128xf32>
      %cst_17 = arith.constant dense<0.000000e+00> : vector<128xf32>
      %20 = vector.multi_reduction <add>, %19, %cst_17 [0] : vector<128x128xf32> to vector<128xf32>
      %21 = vector.shape_cast %20 : vector<128xf32> to vector<1x128xf32>
      %22 = vector.shape_cast %18 : vector<1x128xf32> to vector<1x128xf32>
      %23 = vector.broadcast %22 : vector<1x128xf32> to vector<8x128xf32>
      %24 = vector.shape_cast %23 : vector<8x128xf32> to vector<1x8x128xf32>
      %c0_18 = arith.constant 0 : index
      %c0_19 = arith.constant 0 : index
      %c0_20 = arith.constant 0 : index
      %25 = vector.load %arg6[%c0_18, %c0_19, %c0_20] : memref<1x8x128xf32, #tpu.memory_space<vmem>>, vector<1x8x128xf32>
      tpu.vector_store %arg6[%c0_18, %c0_19, %c0_20], %24 {strides = array<i32>} : memref<1x8x128xf32, #tpu.memory_space<vmem>>, vector<1x8x128xf32>,
      %26 = vector.shape_cast %21 : vector<1x128xf32> to vector<1x128xf32>
      %27 = vector.broadcast %26 : vector<1x128xf32> to vector<8x128xf32>
      %28 = vector.shape_cast %27 : vector<8x128xf32> to vector<1x8x128xf32>
      %c0_21 = arith.constant 0 : index
      %c0_22 = arith.constant 0 : index
      %c0_23 = arith.constant 0 : index
      %29 = vector.load %arg7[%c0_21, %c0_22, %c0_23] : memref<1x8x128xf32, #tpu.memory_space<vmem>>, vector<1x8x128xf32>
      tpu.vector_store %arg7[%c0_21, %c0_22, %c0_23], %28 {strides = array<i32>} : memref<1x8x128xf32, #tpu.memory_space<vmem>>, vector<1x8x128xf32>,
    } else {
    }
    return
  }
  func.func @transform_0(%arg0: i32, %arg1: i32) -> (i32, i32) {
    %c0_i32 = arith.constant 0 : i32
    return %arg0, %arg1 : i32, i32
  }
  func.func @transform_1(%arg0: i32, %arg1: i32) -> (i32, i32) {
    %c0_i32 = arith.constant 0 : i32
    %c0_i32_0 = arith.constant 0 : i32
    return %arg1, %c0_i32 : i32, i32
  }
  func.func @transform_2(%arg0: i32, %arg1: i32) -> (i32, i32) {
    %c0_i32 = arith.constant 0 : i32
    %c0_i32_0 = arith.constant 0 : i32
    %c0_i32_1 = arith.constant 0 : i32
    return %c0_i32, %c0_i32_0 : i32, i32
  }
  func.func @transform_3(%arg0: i32, %arg1: i32) -> (i32, i32) {
    %c0_i32 = arith.constant 0 : i32
    %c0_i32_0 = arith.constant 0 : i32
    return %arg0, %c0_i32 : i32, i32
  }
  func.func @transform_4(%arg0: i32, %arg1: i32) -> (i32, i32, i32) {
    %c0_i32 = arith.constant 0 : i32
    %c0_i32_0 = arith.constant 0 : i32
    %c0_i32_1 = arith.constant 0 : i32
    return %arg0, %c0_i32, %c0_i32_0 : i32, i32, i32
  }
  func.func @transform_5(%arg0: i32, %arg1: i32) -> (i32, i32, i32) {
    %c0_i32 = arith.constant 0 : i32
    %c0_i32_0 = arith.constant 0 : i32
    %c0_i32_1 = arith.constant 0 : i32
    return %arg0, %c0_i32, %c0_i32_0 : i32, i32, i32
  }
}

</mosaic_0001>

<llo_original>
// kernel: conv_block_forward.3
$region0: #{conv_block_forward.3}
  #allocation0 [shape = 'u32[]', space=smem, size = 0x4, offset = 0x4, fixed_abs, tag = 'smem constant byte address 0x4 - core index']
  #allocation1 [shape = 'u32[72,128]{1,0:T(1,128)}', space=vmem, size = 0x9000, scoped, tag = 'internal scratch']
  %s0 = inlined_call_operand.vmem [shape: f32[128,128], index: 0, kind: input, shape index: {}, may-alias: {0,3}]
  %s1 = inlined_call_operand.vmem [shape: f32[1,128], index: 1, kind: input, shape index: {}]
  %s2 = inlined_call_operand.vmem [shape: f32[1,128], index: 2, kind: input, shape index: {}]
  %s3 = inlined_call_operand.vmem [shape: f32[128,128], index: 3, kind: output, shape index: {}, may-alias: {0,3}]
  %s4 = sld [smem:[#allocation0]]
  $region22: #{conv_block_forward.3} parent=0
    _
  %s6 = ssub.s32 1, %s4
  %s7 = scalar_select 0, %s6, %s4
  // Predicated region
  $region2: #{conv_block_forward.3} parent=0 // pred_check
    _
  $region3: #{conv_block_forward.3} parent=0 // pred_check_branch
    %9 = sbr.rel (0) target = $region5
  $region4: #{conv_block_forward.3} parent=0 // pred_region
    _
  $region5: #{conv_block_forward.3} parent=0 // pred_fallthru
    _
  // Predicated region
  $region6: #{conv_block_forward.3} parent=0 // pred_check
    _
  $region7: #{conv_block_forward.3} parent=0 // pred_check_branch
    %11 = sbr.rel (0) target = $region9
  $region8: #{conv_block_forward.3} parent=0 // pred_region
    _
  $region9: #{conv_block_forward.3} parent=0 // pred_fallthru
    _
  // Predicated region
  $region10: #{conv_block_forward.3} parent=0 // pred_check
    _
  $region11: #{conv_block_forward.3} parent=0 // pred_check_branch
    %13 = sbr.rel (0) target = $region13
  $region12: #{conv_block_forward.3} parent=0 // pred_region
    _
  $region13: #{conv_block_forward.3} parent=0 // pred_fallthru
    _
  %v14 = vld [vmem:[%s0] sm:$0xff]
  %v15 = vld [vmem:[%s0 + $0x8] sm:$0xff]
  %v16 = vld [vmem:[%s0 + $0x10] sm:$0xff]
  %v17 = vld [vmem:[%s0 + $0x18] sm:$0xff]
  %v18 = vld [vmem:[%s0 + $0x20] sm:$0xff]
  %v19 = vld [vmem:[%s0 + $0x28] sm:$0xff]
  %v20 = vld [vmem:[%s0 + $0x30] sm:$0xff]
  %v21 = vld [vmem:[%s0 + $0x38] sm:$0xff]
  %v22 = vld [vmem:[%s0 + $0x40] sm:$0xff]
  %v23 = vld [vmem:[%s0 + $0x48] sm:$0xff]
  %v24 = vld [vmem:[%s0 + $0x50] sm:$0xff]
  %v25 = vld [vmem:[%s0 + $0x58] sm:$0xff]
  %v26 = vld [vmem:[%s0 + $0x60] sm:$0xff]
  %v27 = vld [vmem:[%s0 + $0x68] sm:$0xff]
  %v28 = vld [vmem:[%s0 + $0x70] sm:$0xff]
  %v29 = vld [vmem:[%s0 + $0x78] sm:$0xff]
  %v30 = vld [vmem:[%s1] sm:$0x1]
  %v32 = vperm.slane %v30, 0
  %v34 = vmul.f32 %v14, %v32
  %v35 = vmul.f32 %v15, %v32
  %v36 = vmul.f32 %v16, %v32
  %v37 = vmul.f32 %v17, %v32
  %v38 = vmul.f32 %v18, %v32
  %v39 = vmul.f32 %v19, %v32
  %v40 = vmul.f32 %v20, %v32
  %v41 = vmul.f32 %v21, %v32
  %v42 = vmul.f32 %v22, %v32
  %v43 = vmul.f32 %v23, %v32
  %v44 = vmul.f32 %v24, %v32
  %v45 = vmul.f32 %v25, %v32
  %v46 = vmul.f32 %v26, %v32
  %v47 = vmul.f32 %v27, %v32
  %v48 = vmul.f32 %v28, %v32
  %v49 = vmul.f32 %v29, %v32
  %v50 = vld [vmem:[%s2] sm:$0x1]
  %v52 = vperm.slane %v50, 0
  %v54 = vadd.f32 %v34, %v52
  %v55 = vadd.f32 %v35, %v52
  %v56 = vadd.f32 %v36, %v52
  %v57 = vadd.f32 %v37, %v52
  %v58 = vadd.f32 %v38, %v52
  %v59 = vadd.f32 %v39, %v52
  %v60 = vadd.f32 %v40, %v52
  %v61 = vadd.f32 %v41, %v52
  %v62 = vadd.f32 %v42, %v52
  %v63 = vadd.f32 %v43, %v52
  %v64 = vadd.f32 %v44, %v52
  %v65 = vadd.f32 %v45, %v52
  %v66 = vadd.f32 %v46, %v52
  %v67 = vadd.f32 %v47, %v52
  %v68 = vadd.f32 %v48, %v52
  %v69 = vadd.f32 %v49, %v52
  %70 = vst [vmem:[%s3] sm:$0xff] %v54
  %71 = vst [vmem:[%s3 + $0x8] sm:$0xff] %v55
  %72 = vst [vmem:[%s3 + $0x10] sm:$0xff] %v56
  %73 = vst [vmem:[%s3 + $0x18] sm:$0xff] %v57
  %74 = vst [vmem:[%s3 + $0x20] sm:$0xff] %v58
  %75 = vst [vmem:[%s3 + $0x28] sm:$0xff] %v59
  %76 = vst [vmem:[%s3 + $0x30] sm:$0xff] %v60
  %77 = vst [vmem:[%s3 + $0x38] sm:$0xff] %v61
  %78 = vst [vmem:[%s3 + $0x40] sm:$0xff] %v62
  %79 = vst [vmem:[%s3 + $0x48] sm:$0xff] %v63
  %80 = vst [vmem:[%s3 + $0x50] sm:$0xff] %v64
  %81 = vst [vmem:[%s3 + $0x58] sm:$0xff] %v65
  %82 = vst [vmem:[%s3 + $0x60] sm:$0xff] %v66
  %83 = vst [vmem:[%s3 + $0x68] sm:$0xff] %v67
  %84 = vst [vmem:[%s3 + $0x70] sm:$0xff] %v68
  %85 = vst [vmem:[%s3 + $0x78] sm:$0xff] %v69
  // Predicated region
  $region14: #{conv_block_forward.3} parent=0 // pred_check
    _
  $region15: #{conv_block_forward.3} parent=0 // pred_check_branch
    %87 = sbr.rel (0) target = $region17
  $region16: #{conv_block_forward.3} parent=0 // pred_region
    _
  $region17: #{conv_block_forward.3} parent=0 // pred_fallthru
    _
  // Predicated region
  $region18: #{conv_block_forward.3} parent=0 // pred_check
    _
  $region19: #{conv_block_forward.3} parent=0 // pred_check_branch
    %89 = sbr.rel (0) target = $region21
  $region20: #{conv_block_forward.3} parent=0 // pred_region
    _
  $region21: #{conv_block_forward.3} parent=0 // pred_fallthru
    _

// kernel: conv_block_forward.2
$region0: #{conv_block_forward.2}
  #allocation0 [shape = 'u32[]', space=smem, size = 0x4, offset = 0x4, fixed_abs, tag = 'smem constant byte address 0x4 - core index']
  #allocation1 [shape = 'u32[72,128]{1,0:T(1,128)}', space=vmem, size = 0x9000, scoped, tag = 'internal scratch']
  %s0 = inlined_call_operand.vmem [shape: bf16[128,128], index: 0, kind: input, shape index: {}]
  %s1 = inlined_call_operand.vmem [shape: bf16[128,128], index: 1, kind: input, shape index: {}]
  %s2 = inlined_call_operand.vmem [shape: f32[1,128], index: 2, kind: input, shape index: {}]
  %s3 = inlined_call_operand.vmem [shape: f32[128,128], index: 3, kind: output, shape index: {0}]
  %s4 = inlined_call_operand.vmem [shape: f32[1,8,128], index: 4, kind: output, shape index: {1}]
  %s5 = inlined_call_operand.vmem [shape: f32[1,8,128], index: 5, kind: output, shape index: {2}]
  %6 = xla_tuple %s3, %s4, %s5
  %s7 = sld [smem:[#allocation0]]
  $region46: #{conv_block_forward.2} parent=0
    _
  %s9 = ssub.s32 1, %s7
  %s10 = scalar_select 0, %s9, %s7
  // Predicated region
  $region2: #{conv_block_forward.2} parent=0 // pred_check
    _
  $region3: #{conv_block_forward.2} parent=0 // pred_check_branch
    %12 = sbr.rel (0) target = $region5
  $region4: #{conv_block_forward.2} parent=0 // pred_region
    _
  $region5: #{conv_block_forward.2} parent=0 // pred_fallthru
    _
  // Predicated region
  $region6: #{conv_block_forward.2} parent=0 // pred_check
    _
  $region7: #{conv_block_forward.2} parent=0 // pred_check_branch
    %14 = sbr.rel (0) target = $region9
  $region8: #{conv_block_forward.2} parent=0 // pred_region
    _
  $region9: #{conv_block_forward.2} parent=0 // pred_fallthru
    _
  // Predicated region
  $region10: #{conv_block_forward.2} parent=0 // pred_check
    _
  $region11: #{conv_block_forward.2} parent=0 // pred_check_branch
    %16 = sbr.rel (0) target = $region13
  $region12: #{conv_block_forward.2} parent=0 // pred_region
    _
  $region13: #{conv_block_forward.2} parent=0 // pred_fallthru
    _
  %p17 = scmp.eq.s32.totalorder 0, 0
  // Predicated region
  $region14: #{conv_block_forward.2} parent=0 // pred_check
    %p18 = pneg %p17
  $region15: #{conv_block_forward.2} parent=0 // pred_check_branch
    %20 = sbr.rel (%p18) target = $region17
  $region16: #{conv_block_forward.2} parent=0 // pred_region
    %21 = vst [vmem:[%s3] sm:$0xff] 0.0
    %22 = vst [vmem:[%s3 + $0x8] sm:$0xff] 0.0
    %23 = vst [vmem:[%s3 + $0x10] sm:$0xff] 0.0
    %24 = vst [vmem:[%s3 + $0x18] sm:$0xff] 0.0
    %25 = vst [vmem:[%s3 + $0x20] sm:$0xff] 0.0
    %26 = vst [vmem:[%s3 + $0x28] sm:$0xff] 0.0
    %27 = vst [vmem:[%s3 + $0x30] sm:$0xff] 0.0
    %28 = vst [vmem:[%s3 + $0x38] sm:$0xff] 0.0
    %29 = vst [vmem:[%s3 + $0x40] sm:$0xff] 0.0
    %30 = vst [vmem:[%s3 + $0x48] sm:$0xff] 0.0
    %31 = vst [vmem:[%s3 + $0x50] sm:$0xff] 0.0
    %32 = vst [vmem:[%s3 + $0x58] sm:$0xff] 0.0
    %33 = vst [vmem:[%s3 + $0x60] sm:$0xff] 0.0
    %34 = vst [vmem:[%s3 + $0x68] sm:$0xff] 0.0
    %35 = vst [vmem:[%s3 + $0x70] sm:$0xff] 0.0
    %36 = vst [vmem:[%s3 + $0x78] sm:$0xff] 0.0
  $region17: #{conv_block_forward.2} parent=0 // pred_fallthru
    _
  %v37 = vld [vmem:[%s3] sm:$0xff]
  %v38 = vld [vmem:[%s3 + $0x8] sm:$0xff]
  %v39 = vld [vmem:[%s3 + $0x10] sm:$0xff]
  %v40 = vld [vmem:[%s3 + $0x18] sm:$0xff]
  %v41 = vld [vmem:[%s3 + $0x20] sm:$0xff]
  %v42 = vld [vmem:[%s3 + $0x28] sm:$0xff]
  %v43 = vld [vmem:[%s3 + $0x30] sm:$0xff]
  %v44 = vld [vmem:[%s3 + $0x38] sm:$0xff]
  %v45 = vld [vmem:[%s3 + $0x40] sm:$0xff]
  %v46 = vld [vmem:[%s3 + $0x48] sm:$0xff]
  %v47 = vld [vmem:[%s3 + $0x50] sm:$0xff]
  %v48 = vld [vmem:[%s3 + $0x58] sm:$0xff]
  %v49 = vld [vmem:[%s3 + $0x60] sm:$0xff]
  %v50 = vld [vmem:[%s3 + $0x68] sm:$0xff]
  %v51 = vld [vmem:[%s3 + $0x70] sm:$0xff]
  %v52 = vld [vmem:[%s3 + $0x78] sm:$0xff]
  %v53 = vld [vmem:[%s0] sm:$0xf]
  %v54 = vld [vmem:[%s0 + $0x4] sm:$0xf]
  %v55 = vld [vmem:[%s0 + $0x8] sm:$0xf]
  %v56 = vld [vmem:[%s0 + $0xc] sm:$0xf]
  %v57 = vld [vmem:[%s0 + $0x10] sm:$0xf]
  %v58 = vld [vmem:[%s0 + $0x14] sm:$0xf]
  %v59 = vld [vmem:[%s0 + $0x18] sm:$0xf]
  %v60 = vld [vmem:[%s0 + $0x1c] sm:$0xf]
  %v61 = vld [vmem:[%s0 + $0x20] sm:$0xf]
  %v62 = vld [vmem:[%s0 + $0x24] sm:$0xf]
  %v63 = vld [vmem:[%s0 + $0x28] sm:$0xf]
  %v64 = vld [vmem:[%s0 + $0x2c] sm:$0xf]
  %v65 = vld [vmem:[%s0 + $0x30] sm:$0xf]
  %v66 = vld [vmem:[%s0 + $0x34] sm:$0xf]
  %v67 = vld [vmem:[%s0 + $0x38] sm:$0xf]
  %v68 = vld [vmem:[%s0 + $0x3c] sm:$0xf]
  %v69 = vld [vmem:[%s1] sm:$0xf]
  %v70 = vld [vmem:[%s1 + $0x4] sm:$0xf]
  %v71 = vld [vmem:[%s1 + $0x8] sm:$0xf]
  %v72 = vld [vmem:[%s1 + $0xc] sm:$0xf]
  %v73 = vld [vmem:[%s1 + $0x10] sm:$0xf]
  %v74 = vld [vmem:[%s1 + $0x14] sm:$0xf]
  %v75 = vld [vmem:[%s1 + $0x18] sm:$0xf]
  %v76 = vld [vmem:[%s1 + $0x1c] sm:$0xf]
  %v77 = vld [vmem:[%s1 + $0x20] sm:$0xf]
  %v78 = vld [vmem:[%s1 + $0x24] sm:$0xf]
  %v79 = vld [vmem:[%s1 + $0x28] sm:$0xf]
  %v80 = vld [vmem:[%s1 + $0x2c] sm:$0xf]
  %v81 = vld [vmem:[%s1 + $0x30] sm:$0xf]
  %v82 = vld [vmem:[%s1 + $0x34] sm:$0xf]
  %v83 = vld [vmem:[%s1 + $0x38] sm:$0xf]
  %v84 = vld [vmem:[%s1 + $0x3c] sm:$0xf]
  %v101 = vunpack.c.l.b16 %v53
  %v102 = vunpack.c.l.b16 %v54
  %v103 = vunpack.c.l.b16 %v55
  %v104 = vunpack.c.l.b16 %v56
  %v105 = vunpack.c.l.b16 %v57
  %v106 = vunpack.c.l.b16 %v58
  %v107 = vunpack.c.l.b16 %v59
  %v108 = vunpack.c.l.b16 %v60
  %v109 = vunpack.c.l.b16 %v61
  %v110 = vunpack.c.l.b16 %v62
  %v111 = vunpack.c.l.b16 %v63
  %v112 = vunpack.c.l.b16 %v64
  %v113 = vunpack.c.l.b16 %v65
  %v114 = vunpack.c.l.b16 %v66
  %v115 = vunpack.c.l.b16 %v67
  %v116 = vunpack.c.l.b16 %v68
  %v117 = vpack.c.b16 %v102, %v101
  %v118 = vpack.c.b16 %v104, %v103
  %v119 = vpack.c.b16 %v106, %v105
  %v120 = vpack.c.b16 %v108, %v107
  %v121 = vpack.c.b16 %v110, %v109
  %v122 = vpack.c.b16 %v112, %v111
  %v123 = vpack.c.b16 %v114, %v113
  %v124 = vpack.c.b16 %v116, %v115
  %v149 = vunpack.c.l.b16 %v69
  %v150 = vunpack.c.l.b16 %v70
  %v151 = vunpack.c.l.b16 %v71
  %v152 = vunpack.c.l.b16 %v72
  %v153 = vunpack.c.l.b16 %v73
  %v154 = vunpack.c.l.b16 %v74
  %v155 = vunpack.c.l.b16 %v75
  %v156 = vunpack.c.l.b16 %v76
  %v157 = vunpack.c.l.b16 %v77
  %v158 = vunpack.c.l.b16 %v78
  %v159 = vunpack.c.l.b16 %v79
  %v160 = vunpack.c.l.b16 %v80
  %v161 = vunpack.c.l.b16 %v81
  %v162 = vunpack.c.l.b16 %v82
  %v163 = vunpack.c.l.b16 %v83
  %v164 = vunpack.c.l.b16 %v84
  %v165 = vpack.c.b16 %v150, %v149
  %v166 = vpack.c.b16 %v152, %v151
  %v167 = vpack.c.b16 %v154, %v153
  %v168 = vpack.c.b16 %v156, %v155
  %v169 = vpack.c.b16 %v158, %v157
  %v170 = vpack.c.b16 %v160, %v159
  %v171 = vpack.c.b16 %v162, %v161
  %v172 = vpack.c.b16 %v164, %v163
  %181 = vmatpush.bf16.msra.mxu0 %v172
  %182 = vmatpush.bf16.msra.mxu0 %v171
  %183 = vmatpush.bf16.msra.mxu0 %v170
  %184 = vmatpush.bf16.msra.mxu0 %v169
  %185 = vmatpush.bf16.msra.mxu0 %v168
  %186 = vmatpush.bf16.msra.mxu0 %v167
  %187 = vmatpush.bf16.msra.mxu0 %v166
  %188 = vmatpush.bf16.msra.mxu0 %v165
  %189 = vmatmul.bf16.gmra.mxu0 %v117
  %v190 = vpop.f32.mrf.mxu0
  %v191 = vadd.f32 0.0, %v190
  %v192 = vpop.f32.mrf.mxu0
  %v193 = vadd.f32 0.0, %v192
  %194 = vmatmul.bf16.gmra.mxu0 %v118
  %v195 = vpop.f32.mrf.mxu0
  %v196 = vadd.f32 0.0, %v195
  %v197 = vpop.f32.mrf.mxu0
  %v198 = vadd.f32 0.0, %v197
  %199 = vmatmul.bf16.gmra.mxu0 %v119
  %v200 = vpop.f32.mrf.mxu0
  %v201 = vadd.f32 0.0, %v200
  %v202 = vpop.f32.mrf.mxu0
  %v203 = vadd.f32 0.0, %v202
  %204 = vmatmul.bf16.gmra.mxu0 %v120
  %v205 = vpop.f32.mrf.mxu0
  %v206 = vadd.f32 0.0, %v205
  %v207 = vpop.f32.mrf.mxu0
  %v208 = vadd.f32 0.0, %v207
  %209 = vmatmul.bf16.gmra.mxu0 %v121
  %v210 = vpop.f32.mrf.mxu0
  %v211 = vadd.f32 0.0, %v210
  %v212 = vpop.f32.mrf.mxu0
  %v213 = vadd.f32 0.0, %v212
  %214 = vmatmul.bf16.gmra.mxu0 %v122
  %v215 = vpop.f32.mrf.mxu0
  %v216 = vadd.f32 0.0, %v215
  %v217 = vpop.f32.mrf.mxu0
  %v218 = vadd.f32 0.0, %v217
  %219 = vmatmul.bf16.gmra.mxu0 %v123
  %v220 = vpop.f32.mrf.mxu0
  %v221 = vadd.f32 0.0, %v220
  %v222 = vpop.f32.mrf.mxu0
  %v223 = vadd.f32 0.0, %v222
  %224 = vmatmul.bf16.gmra.mxu0 %v124
  %v225 = vpop.f32.mrf.mxu0
  %v226 = vadd.f32 0.0, %v225
  %v227 = vpop.f32.mrf.mxu0
  %v228 = vadd.f32 0.0, %v227
  %229 = vdwg.mxu0
  %v230 = vadd.f32 %v37, %v191
  %v231 = vadd.f32 %v38, %v193
  %v232 = vadd.f32 %v39, %v196
  %v233 = vadd.f32 %v40, %v198
  %v234 = vadd.f32 %v41, %v201
  %v235 = vadd.f32 %v42, %v203
  %v236 = vadd.f32 %v43, %v206
  %v237 = vadd.f32 %v44, %v208
  %v238 = vadd.f32 %v45, %v211
  %v239 = vadd.f32 %v46, %v213
  %v240 = vadd.f32 %v47, %v216
  %v241 = vadd.f32 %v48, %v218
  %v242 = vadd.f32 %v49, %v221
  %v243 = vadd.f32 %v50, %v223
  %v244 = vadd.f32 %v51, %v226
  %v245 = vadd.f32 %v52, %v228
  %246 = vst [vmem:[%s3] sm:$0xff] %v230
  %247 = vst [vmem:[%s3 + $0x8] sm:$0xff] %v231
  %248 = vst [vmem:[%s3 + $0x10] sm:$0xff] %v232
  %249 = vst [vmem:[%s3 + $0x18] sm:$0xff] %v233
  %250 = vst [vmem:[%s3 + $0x20] sm:$0xff] %v234
  %251 = vst [vmem:[%s3 + $0x28] sm:$0xff] %v235
  %252 = vst [vmem:[%s3 + $0x30] sm:$0xff] %v236
  %253 = vst [vmem:[%s3 + $0x38] sm:$0xff] %v237
  %254 = vst [vmem:[%s3 + $0x40] sm:$0xff] %v238
  %255 = vst [vmem:[%s3 + $0x48] sm:$0xff] %v239
  %256 = vst [vmem:[%s3 + $0x50] sm:$0xff] %v240
  %257 = vst [vmem:[%s3 + $0x58] sm:$0xff] %v241
  %258 = vst [vmem:[%s3 + $0x60] sm:$0xff] %v242
  %259 = vst [vmem:[%s3 + $0x68] sm:$0xff] %v243
  %260 = vst [vmem:[%s3 + $0x70] sm:$0xff] %v244
  %261 = vst [vmem:[%s3 + $0x78] sm:$0xff] %v245
  // Predicated region
  $region18: #{conv_block_forward.2} parent=0 // pred_check
    %p262 = pneg %p17
  $region19: #{conv_block_forward.2} parent=0 // pred_check_branch
    %264 = sbr.rel (%p262) target = $region21
  $region20: #{conv_block_forward.2} parent=0 // pred_region
    %v265 = vld [vmem:[%s3] sm:$0xff]
    %v266 = vld [vmem:[%s3 + $0x8] sm:$0xff]
    %v267 = vld [vmem:[%s3 + $0x10] sm:$0xff]
    %v268 = vld [vmem:[%s3 + $0x18] sm:$0xff]
    %v269 = vld [vmem:[%s3 + $0x20] sm:$0xff]
    %v270 = vld [vmem:[%s3 + $0x28] sm:$0xff]
    %v271 = vld [vmem:[%s3 + $0x30] sm:$0xff]
    %v272 = vld [vmem:[%s3 + $0x38] sm:$0xff]
    %v273 = vld [vmem:[%s3 + $0x40] sm:$0xff]
    %v274 = vld [vmem:[%s3 + $0x48] sm:$0xff]
    %v275 = vld [vmem:[%s3 + $0x50] sm:$0xff]
    %v276 = vld [vmem:[%s3 + $0x58] sm:$0xff]
    %v277 = vld [vmem:[%s3 + $0x60] sm:$0xff]
    %v278 = vld [vmem:[%s3 + $0x68] sm:$0xff]
    %v279 = vld [vmem:[%s3 + $0x70] sm:$0xff]
    %v280 = vld [vmem:[%s3 + $0x78] sm:$0xff]
    %v281 = vld [vmem:[%s2] sm:$0x1]
    %v283 = vperm.slane %v281, 0
    %v285 = vadd.f32 %v265, %v283
    %v286 = vadd.f32 %v266, %v283
    %v287 = vadd.f32 %v267, %v283
    %v288 = vadd.f32 %v268, %v283
    %v289 = vadd.f32 %v269, %v283
    %v290 = vadd.f32 %v270, %v283
    %v291 = vadd.f32 %v271, %v283
    %v292 = vadd.f32 %v272, %v283
    %v293 = vadd.f32 %v273, %v283
    %v294 = vadd.f32 %v274, %v283
    %v295 = vadd.f32 %v275, %v283
    %v296 = vadd.f32 %v276, %v283
    %v297 = vadd.f32 %v277, %v283
    %v298 = vadd.f32 %v278, %v283
    %v299 = vadd.f32 %v279, %v283
    %v300 = vadd.f32 %v280, %v283
    %301 = vst [vmem:[%s3] sm:$0xff] %v285
    %302 = vst [vmem:[%s3 + $0x8] sm:$0xff] %v286
    %303 = vst [vmem:[%s3 + $0x10] sm:$0xff] %v287
    %304 = vst [vmem:[%s3 + $0x18] sm:$0xff] %v288
    %305 = vst [vmem:[%s3 + $0x20] sm:$0xff] %v289
    %306 = vst [vmem:[%s3 + $0x28] sm:$0xff] %v290
    %307 = vst [vmem:[%s3 + $0x30] sm:$0xff] %v291
    %308 = vst [vmem:[%s3 + $0x38] sm:$0xff] %v292
    %309 = vst [vmem:[%s3 + $0x40] sm:$0xff] %v293
    %310 = vst [vmem:[%s3 + $0x48] sm:$0xff] %v294
    %311 = vst [vmem:[%s3 + $0x50] sm:$0xff] %v295
    %312 = vst [vmem:[%s3 + $0x58] sm:$0xff] %v296
    %313 = vst [vmem:[%s3 + $0x60] sm:$0xff] %v297
    %314 = vst [vmem:[%s3 + $0x68] sm:$0xff] %v298
    %315 = vst [vmem:[%s3 + $0x70] sm:$0xff] %v299
    %316 = vst [vmem:[%s3 + $0x78] sm:$0xff] %v300
    %v317 = vadd.f32 %v285, %v286
    %v318 = vadd.f32 %v317, %v287
    %v319 = vadd.f32 %v318, %v288
    %v320 = vadd.f32 %v319, %v289
    %v321 = vadd.f32 %v320, %v290
    %v322 = vadd.f32 %v321, %v291
    %v323 = vadd.f32 %v322, %v292
    %v324 = vadd.f32 %v323, %v293
    %v325 = vadd.f32 %v324, %v294
    %v326 = vadd.f32 %v325, %v295
    %v327 = vadd.f32 %v326, %v296
    %v328 = vadd.f32 %v327, %v297
    %v329 = vadd.f32 %v328, %v298
    %v330 = vadd.f32 %v329, %v299
    %v331 = vadd.f32 %v330, %v300
    %v332 = vrot.slane %v331, 4
    %v333 = vadd.f32 %v331, %v332
    %v334 = vrot.slane %v333, 2
    %v335 = vadd.f32 %v333, %v334
    %v336 = vrot.slane %v335, 1
    %v337 = vadd.f32 %v335, %v336
    %v338 = vmul.f32 %v285, %v285
    %v339 = vmul.f32 %v286, %v286
    %v340 = vmul.f32 %v287, %v287
    %v341 = vmul.f32 %v288, %v288
    %v342 = vmul.f32 %v289, %v289
    %v343 = vmul.f32 %v290, %v290
    %v344 = vmul.f32 %v291, %v291
    %v345 = vmul.f32 %v292, %v292
    %v346 = vmul.f32 %v293, %v293
    %v347 = vmul.f32 %v294, %v294
    %v348 = vmul.f32 %v295, %v295
    %v349 = vmul.f32 %v296, %v296
    %v350 = vmul.f32 %v297, %v297
    %v351 = vmul.f32 %v298, %v298
    %v352 = vmul.f32 %v299, %v299
    %v353 = vmul.f32 %v300, %v300
    %v354 = vadd.f32 %v338, %v339
    %v355 = vadd.f32 %v354, %v340
    %v356 = vadd.f32 %v355, %v341
    %v357 = vadd.f32 %v356, %v342
    %v358 = vadd.f32 %v357, %v343
    %v359 = vadd.f32 %v358, %v344
    %v360 = vadd.f32 %v359, %v345
    %v361 = vadd.f32 %v360, %v346
    %v362 = vadd.f32 %v361, %v347
    %v363 = vadd.f32 %v362, %v348
    %v364 = vadd.f32 %v363, %v349
    %v365 = vadd.f32 %v364, %v350
    %v366 = vadd.f32 %v365, %v351
    %v367 = vadd.f32 %v366, %v352
    %v368 = vadd.f32 %v367, %v353
    %v369 = vrot.slane %v368, 4
    %v370 = vadd.f32 %v368, %v369
    %v371 = vrot.slane %v370, 2
    %v372 = vadd.f32 %v370, %v371
    %v373 = vrot.slane %v372, 1
    %v374 = vadd.f32 %v372, %v373
    %375 = vst [vmem:[%s4] sm:$0xff] %v337
    %376 = vst [vmem:[%s5] sm:$0xff] %v374
  $region21: #{conv_block_forward.2} parent=0 // pred_fallthru
    _
  // Predicated region
  $region22: #{conv_block_forward.2} parent=0 // pred_check
    _
  $region23: #{conv_block_forward.2} parent=0 // pred_check_branch
    %378 = sbr.rel (0) target = $region25
  $region24: #{conv_block_forward.2} parent=0 // pred_region
    _
  $region25: #{conv_block_forward.2} parent=0 // pred_fallthru
    _
  // Predicated region
  $region26: #{conv_block_forward.2} parent=0 // pred_check
    _
  $region27: #{conv_block_forward.2} parent=0 // pred_check_branch
    %380 = sbr.rel (0) target = $region29
  $region28: #{conv_block_forward.2} parent=0 // pred_region
    _
  $region29: #{conv_block_forward.2} parent=0 // pred_fallthru
    _
  // Predicated region
  $region30: #{conv_block_forward.2} parent=0 // pred_check
    _
  $region31: #{conv_block_forward.2} parent=0 // pred_check_branch
    %382 = sbr.rel (0) target = $region33
  $region32: #{conv_block_forward.2} parent=0 // pred_region
    _
  $region33: #{conv_block_forward.2} parent=0 // pred_fallthru
    _
  // Predicated region
  $region34: #{conv_block_forward.2} parent=0 // pred_check
    _
  $region35: #{conv_block_forward.2} parent=0 // pred_check_branch
    %384 = sbr.rel (0) target = $region37
  $region36: #{conv_block_forward.2} parent=0 // pred_region
    _
  $region37: #{conv_block_forward.2} parent=0 // pred_fallthru
    _
  // Predicated region
  $region38: #{conv_block_forward.2} parent=0 // pred_check
    _
  $region39: #{conv_block_forward.2} parent=0 // pred_check_branch
    %386 = sbr.rel (0) target = $region41
  $region40: #{conv_block_forward.2} parent=0 // pred_region
    _
  $region41: #{conv_block_forward.2} parent=0 // pred_fallthru
    _
  // Predicated region
  $region42: #{conv_block_forward.2} parent=0 // pred_check
    _
  $region43: #{conv_block_forward.2} parent=0 // pred_check_branch
    %388 = sbr.rel (0) target = $region45
  $region44: #{conv_block_forward.2} parent=0 // pred_region
    _
  $region45: #{conv_block_forward.2} parent=0 // pred_fallthru
    _

</llo_original>
